<compile_context>
chip_gen: v7x
topology: tpu7x:2x2x1
jax: 0.10.0
libtpu: 0.0.40
codegen_flags: <defaults>
</compile_context>

<pallas_src>
import jax
import jax.numpy as jnp
from jax.experimental import pallas as pl
from jax.experimental.pallas import tpu as pltpu


def _sae_kernel(x_ref, we_ref, be_ref, wd_ref, bd_ref, recon_ref, z_ref):
    x = x_ref[...]
    we = we_ref[...]

    # Encoder: linear + ReLU (MXU matmul, f32 accumulate).
    z = jnp.dot(x, we, preferred_element_type=jnp.float32)
    z = z + be_ref[...].astype(jnp.float32)
    z = jnp.maximum(z, 0.0)
    z_ref[...] = z.astype(z_ref.dtype)

    # Decoder: linear. Feed the MXU in the weight dtype (bf16-friendly when the
    # caller passes bf16 weights) while keeping the f32 accumulation.
    wd = wd_ref[...]
    recon = jnp.dot(z.astype(wd.dtype), wd, preferred_element_type=jnp.float32)
    recon = recon + bd_ref[...].astype(jnp.float32)
    recon_ref[...] = recon.astype(recon_ref.dtype)


def _pick_batch_tile(batch):
    # Prefer sublane-aligned (multiple of 8), MXU-friendly (<=256) tiles that
    # give >= 2 grid steps so the pipeline actually overlaps DMA with matmul
    # and the batch axis can be sharded across v7x's two TensorCores.
    for cand in (256, 128, 64, 32, 16, 8):
        if batch % cand == 0 and batch // cand >= 2:
            return cand
    for cand in (256, 128, 64, 32, 16, 8):
        if batch % cand == 0:
            return cand
    return batch


def sparse_autoencoder_forward(x, w_enc, b_enc, w_dec, b_dec, *,
                               batch_tile=None, vmem_limit_bytes=64 << 20):
    """x: (B, D_in); w_enc: (D_in, H); b_enc: (1, H); w_dec: (H, D_in); b_dec: (1, D_in)."""
    B, D_in = x.shape
    H = w_enc.shape[1]
    assert w_enc.shape == (D_in, H)
    assert w_dec.shape == (H, D_in)
    b_enc = b_enc.reshape(1, H)
    b_dec = b_dec.reshape(1, D_in)

    if batch_tile is None:
        batch_tile = _pick_batch_tile(B)
    assert B % batch_tile == 0
    grid = (B // batch_tile,)

    # Weights / biases are grid-invariant (constant index_map): keep them
    # single-buffered so they do not pay 2x VMEM for pointless double-buffering.
    def resident(shape):
        return pl.BlockSpec(shape, lambda i: (0, 0), pipeline_mode=pl.Buffered(1))

    wbytes = jnp.dtype(w_enc.dtype).itemsize
    xbytes = jnp.dtype(x.dtype).itemsize
    cost = pl.CostEstimate(
        flops=4 * B * D_in * H,              # two matmuls, 2*B*D_in*H each
        transcendentals=0,
        bytes_accessed=(2 * D_in * H + H + D_in) * wbytes
                       + (2 * B * D_in + B * H) * xbytes,
    )

    # TODO(synk): for very large hidden sizes where both weight matrices no
    # longer fit in VMEM (notably v7x's 64 MiB/TC), add a second grid axis over
    # H with an f32 VMEM accumulator for the decoder (K-reduction, axis marked
    # "arbitrary", pl.when init/finalize).

    kernel = pl.pallas_call(
        _sae_kernel,
        out_shape=(
            jax.ShapeDtypeStruct((B, D_in), x.dtype),   # reconstructed_x
            jax.ShapeDtypeStruct((B, H), x.dtype),      # encoded_z
        ),
        grid_spec=pltpu.PrefetchScalarGridSpec(
            num_scalar_prefetch=0,
            grid=grid,
            in_specs=[
                pl.BlockSpec((batch_tile, D_in), lambda i: (i, 0)),  # x tile
                resident((D_in, H)),                                  # W_enc
                resident((1, H)),                                     # b_enc
                resident((H, D_in)),                                  # W_dec
                resident((1, D_in)),                                  # b_dec
            ],
            out_specs=[
                pl.BlockSpec((batch_tile, D_in), lambda i: (i, 0)),   # recon
                pl.BlockSpec((batch_tile, H), lambda i: (i, 0)),      # z
            ],
        ),
        compiler_params=pltpu.CompilerParams(
            dimension_semantics=("parallel",),
            vmem_limit_bytes=vmem_limit_bytes,
        ),
        cost_estimate=cost,
    )
    return kernel(x, w_enc, b_enc, w_dec, b_dec)


def init_params(key, input_size, hidden_size, dtype=jnp.float32):
    """Deterministic init mimicking nn.Linear's uniform(-1/sqrt(fan_in), 1/sqrt(fan_in))."""
    k1, k2, k3, k4 = jax.random.split(key, 4)
    bound_e = 1.0 / (input_size ** 0.5)
    bound_d = 1.0 / (hidden_size ** 0.5)
    # Stored pre-transposed for x @ W layout.
    w_enc = jax.random.uniform(k1, (input_size, hidden_size), dtype, -bound_e, bound_e)
    b_enc = jax.random.uniform(k2, (1, hidden_size), dtype, -bound_e, bound_e)
    w_dec = jax.random.uniform(k3, (hidden_size, input_size), dtype, -bound_d, bound_d)
    b_dec = jax.random.uniform(k4, (1, input_size), dtype, -bound_d, bound_d)
    return w_enc, b_enc, w_dec, b_dec


if __name__ == "__main__":
    key = jax.random.PRNGKey(0)
    kx, kp = jax.random.split(key)

    # Small demo shapes; batch=16 -> batch_tile=8 -> grid=(2,) so the pipeline
    # and the megacore sharding paths are exercised even at toy scale.
    batch, input_size, hidden_size = 16, 256, 128

    x = jax.random.normal(kx, (batch, input_size), dtype=jnp.float32)
    w_enc, b_enc, w_dec, b_dec = init_params(kp, input_size, hidden_size)

    recon, z = sparse_autoencoder_forward(x, w_enc, b_enc, w_dec, b_dec)
    recon, z = jax.block_until_ready((recon, z))

    # Pure-JAX reference check.
    z_ref = jnp.maximum(x @ w_enc + b_enc, 0.0)
    recon_ref = z_ref @ w_dec + b_dec
    assert jnp.allclose(z, z_ref, atol=1e-5, rtol=1e-5)
    assert jnp.allclose(recon, recon_ref, atol=1e-5, rtol=1e-5)

    print("KERNEL_OK")
</pallas_src>

<mosaic_0001>
module attributes {stable_mosaic.version = 11 : i64} {
  func.func @_sae_kernel(%arg0: i32, %arg1: memref<8x256xf32, #tpu.memory_space<vmem>>, %arg2: memref<256x128xf32, #tpu.memory_space<vmem>>, %arg3: memref<1x128xf32, #tpu.memory_space<vmem>>, %arg4: memref<128x256xf32, #tpu.memory_space<vmem>>, %arg5: memref<1x256xf32, #tpu.memory_space<vmem>>, %arg6: memref<8x256xf32, #tpu.memory_space<vmem>>, %arg7: memref<8x128xf32, #tpu.memory_space<vmem>>) attributes {dimension_semantics = [#tpu.dimension_semantics<parallel>], iteration_bounds = array<i64: 2>, scalar_prefetch = 0 : i64, scratch_operands = 0 : i64, tpu.core_type = #tpu.core_type<tc>, window_params = [{transform_indices = @transform_0, window_bounds = array<i64: 8, 256>}, {pipeline_mode = #tpu.pipeline_mode<synchronous>, transform_indices = @transform_1, window_bounds = array<i64: 256, 128>}, {pipeline_mode = #tpu.pipeline_mode<synchronous>, transform_indices = @transform_2, window_bounds = array<i64: 1, 128>}, {pipeline_mode = #tpu.pipeline_mode<synchronous>, transform_indices = @transform_3, window_bounds = array<i64: 128, 256>}, {pipeline_mode = #tpu.pipeline_mode<synchronous>, transform_indices = @transform_4, window_bounds = array<i64: 1, 256>}, {transform_indices = @transform_5, window_bounds = array<i64: 8, 256>}, {transform_indices = @transform_6, window_bounds = array<i64: 8, 128>}]} {
    %c0 = arith.constant 0 : index
    %c0_0 = arith.constant 0 : index
    %0 = vector.load %arg1[%c0, %c0_0] : memref<8x256xf32, #tpu.memory_space<vmem>>, vector<8x256xf32>
    %c0_1 = arith.constant 0 : index
    %c0_2 = arith.constant 0 : index
    %1 = vector.load %arg2[%c0_1, %c0_2] : memref<256x128xf32, #tpu.memory_space<vmem>>, vector<256x128xf32>
    %cst = arith.constant dense<0.000000e+00> : vector<8x128xf32>
    %2 = tpu.matmul %0, %1, %cst {dimension_numbers = #tpu.dot_dimension_numbers<[1], [0], [0], [1], [0, 0, 1, 1], [], []>} : vector<8x256xf32>, vector<256x128xf32>, vector<8x128xf32> -> vector<8x128xf32>
    %c0_3 = arith.constant 0 : index
    %c0_4 = arith.constant 0 : index
    %3 = vector.load %arg3[%c0_3, %c0_4] : memref<1x128xf32, #tpu.memory_space<vmem>>, vector<1x128xf32>
    %4 = vector.broadcast %3 : vector<1x128xf32> to vector<8x128xf32>
    %5 = arith.addf %2, %4 : vector<8x128xf32>
    %cst_5 = arith.constant 0.000000e+00 : f32
    %6 = vector.broadcast %cst_5 : f32 to vector<8x128xf32>
    %7 = arith.maximumf %5, %6 : vector<8x128xf32>
    %c0_6 = arith.constant 0 : index
    %c0_7 = arith.constant 0 : index
    %8 = vector.load %arg7[%c0_6, %c0_7] : memref<8x128xf32, #tpu.memory_space<vmem>>, vector<8x128xf32>
    tpu.vector_store %arg7[%c0_6, %c0_7], %7 {strides = array<i32>} : memref<8x128xf32, #tpu.memory_space<vmem>>, vector<8x128xf32>,
    %c0_8 = arith.constant 0 : index
    %c0_9 = arith.constant 0 : index
    %9 = vector.load %arg4[%c0_8, %c0_9] : memref<128x256xf32, #tpu.memory_space<vmem>>, vector<128x256xf32>
    %cst_10 = arith.constant dense<0.000000e+00> : vector<8x256xf32>
    %10 = tpu.matmul %7, %9, %cst_10 {dimension_numbers = #tpu.dot_dimension_numbers<[1], [0], [0], [1], [0, 0, 1, 1], [], []>} : vector<8x128xf32>, vector<128x256xf32>, vector<8x256xf32> -> vector<8x256xf32>
    %c0_11 = arith.constant 0 : index
    %c0_12 = arith.constant 0 : index
    %11 = vector.load %arg5[%c0_11, %c0_12] : memref<1x256xf32, #tpu.memory_space<vmem>>, vector<1x256xf32>
    %12 = vector.broadcast %11 : vector<1x256xf32> to vector<8x256xf32>
    %13 = arith.addf %10, %12 : vector<8x256xf32>
    %c0_13 = arith.constant 0 : index
    %c0_14 = arith.constant 0 : index
    %14 = vector.load %arg6[%c0_13, %c0_14] : memref<8x256xf32, #tpu.memory_space<vmem>>, vector<8x256xf32>
    tpu.vector_store %arg6[%c0_13, %c0_14], %13 {strides = array<i32>} : memref<8x256xf32, #tpu.memory_space<vmem>>, vector<8x256xf32>,
    return
  }
  func.func @transform_0(%arg0: i32) -> (i32, i32) {
    %c0_i32 = arith.constant 0 : i32
    %c0_i32_0 = arith.constant 0 : i32
    return %arg0, %c0_i32 : i32, i32
  }
  func.func @transform_1(%arg0: i32) -> (i32, i32) {
    %c0_i32 = arith.constant 0 : i32
    %c0_i32_0 = arith.constant 0 : i32
    %c0_i32_1 = arith.constant 0 : i32
    return %c0_i32, %c0_i32_0 : i32, i32
  }
  func.func @transform_2(%arg0: i32) -> (i32, i32) {
    %c0_i32 = arith.constant 0 : i32
    %c0_i32_0 = arith.constant 0 : i32
    %c0_i32_1 = arith.constant 0 : i32
    return %c0_i32, %c0_i32_0 : i32, i32
  }
  func.func @transform_3(%arg0: i32) -> (i32, i32) {
    %c0_i32 = arith.constant 0 : i32
    %c0_i32_0 = arith.constant 0 : i32
    %c0_i32_1 = arith.constant 0 : i32
    return %c0_i32, %c0_i32_0 : i32, i32
  }
  func.func @transform_4(%arg0: i32) -> (i32, i32) {
    %c0_i32 = arith.constant 0 : i32
    %c0_i32_0 = arith.constant 0 : i32
    %c0_i32_1 = arith.constant 0 : i32
    return %c0_i32, %c0_i32_0 : i32, i32
  }
  func.func @transform_5(%arg0: i32) -> (i32, i32) {
    %c0_i32 = arith.constant 0 : i32
    %c0_i32_0 = arith.constant 0 : i32
    return %arg0, %c0_i32 : i32, i32
  }
  func.func @transform_6(%arg0: i32) -> (i32, i32) {
    %c0_i32 = arith.constant 0 : i32
    %c0_i32_0 = arith.constant 0 : i32
    return %arg0, %c0_i32 : i32, i32
  }
}

</mosaic_0001>

<llo_original>
// kernel: tpu_custom_call.1
$region0: #{tpu_custom_call.1}
  #allocation0 [shape = 'u32[]', space=smem, size = 0x4, offset = 0x4, fixed_abs, tag = 'smem constant byte address 0x4 - core index']
  #allocation1 [shape = 'u32[144,128]{1,0:T(1,128)}', space=vmem, size = 0x12000, scoped, tag = 'internal scratch']
  %s0 = inlined_call_operand.hbm [shape: f32[16,256], index: 0, kind: input, shape index: {}]
  %s1 = inlined_call_operand.hbm [shape: f32[256,128], index: 1, kind: input, shape index: {}]
  %s2 = inlined_call_operand.hbm [shape: f32[1,128], index: 2, kind: input, shape index: {}]
  %s3 = inlined_call_operand.hbm [shape: f32[128,256], index: 3, kind: input, shape index: {}]
  %s4 = inlined_call_operand.hbm [shape: f32[1,256], index: 4, kind: input, shape index: {}]
  %s5 = inlined_call_operand.hbm [shape: f32[16,256], index: 5, kind: output, shape index: {0}]
  %s6 = inlined_call_operand.hbm [shape: f32[16,128], index: 6, kind: output, shape index: {1}]
  %7 = xla_tuple %s5, %s6
  %s8 = sld [smem:[#allocation0]]
  $region81: #{tpu_custom_call.1} parent=0
    _
  %s10 = ssub.s32 1, %s8
  %s11 = scalar_select 0, %s10, %s8
  $region1: #{tpu_custom_call.1} parent=0
    #allocation2 [shape = 'u8[16384]{0}', space=vmem, size = 0x4000, scoped, tag = 'input window, operand 0']
    #allocation3 [shape = 's32[2]{0}', space=sflag, size = 0x8, scoped, tag = 'scoped memory for tpu_custom_call.1']
    #allocation4 [shape = 's32[2]{0}', space=sflag, size = 0x8, scoped, tag = 'scoped memory for tpu_custom_call.1']
    #allocation5 [shape = 'u8[131072]{0}', space=vmem, size = 0x20000, scoped, tag = 'input window, operand 1, single buffered']
    #allocation6 [shape = 's32[1]{0}', space=sflag, size = 0x4, scoped, tag = 'scoped memory for tpu_custom_call.1']
    #allocation7 [shape = 'u8[512]{0}', space=vmem, size = 0x400, scoped, tag = 'input window, operand 2, single buffered']
    #allocation8 [shape = 'u8[131072]{0}', space=vmem, size = 0x20000, scoped, tag = 'input window, operand 3, single buffered']
    #allocation9 [shape = 's32[1]{0}', space=sflag, size = 0x4, scoped, tag = 'scoped memory for tpu_custom_call.1']
    #allocation10 [shape = 'u8[1024]{0}', space=vmem, size = 0x400, scoped, tag = 'input window, operand 4, single buffered']
    #allocation11 [shape = 'u8[16384]{0}', space=vmem, size = 0x4000, scoped, tag = 'output window, operand 0']
    #allocation12 [shape = 'u8[8192]{0}', space=vmem, size = 0x2000, scoped, tag = 'output window, operand 1']
    #allocation13 [shape = 's32[2]{0}', space=sflag, size = 0x8, scoped, tag = 'scoped memory for tpu_custom_call.1']
    %12 = vsyncpa [#allocation3], 0
    %s13 = scalar_lea.sflag [#allocation3], 1
    %14 = vsyncpa %s13, 0
    %15 = vsyncpa [#allocation6], 0
    %16 = vsyncpa [#allocation9], 0
    %17 = vsyncpa [#allocation4], 0
    %s18 = scalar_lea.sflag [#allocation4], 1
    %19 = vsyncpa %s18, 0
    %20 = vsyncpa [#allocation13], 0
    %s21 = scalar_lea.sflag [#allocation13], 1
    %22 = vsyncpa %s21, 0
    loop: start=0, step=1, limit=4
    $region2: #{tpu_custom_call.1} parent=1 // loop_pre_header
      _
    $region3: #{tpu_custom_call.1} parent=1 // loop_header
      %s24 = sphi 0, %s28
      %p25 = scmp.ge.s32.totalorder %s24, 4
      %s34 = sphi 0, %s36
      %s37 = sphi 0, %s34
      %s38 = sphi 0, %s37
      %s54 = sphi 0, %s38
      %s58 = sphi 0, %s58
      %s60 = sphi 0, %s58
      %s61 = sphi 0, %s60
      %s75 = sphi 0, %s61
      %s79 = sphi 0, %s79
      %s81 = sphi 0, %s79
      %s82 = sphi 0, %s81
      %s96 = sphi 0, %s82
      %s100 = sphi 0, %s100
      %s102 = sphi 0, %s100
      %s103 = sphi 0, %s102
      %s117 = sphi 0, %s103
      %s121 = sphi 0, %s121
      %s123 = sphi 0, %s121
      %s124 = sphi 0, %s123
      %s138 = sphi 0, %s124
      %s144 = sphi 0, %s146
      %s147 = sphi 0, %s144
      %s148 = sphi 0, %s147
      %s164 = sphi 0, %s148
      %s170 = sphi 0, %s172
      %s173 = sphi 0, %s170
      %s174 = sphi 0, %s173
      %s190 = sphi 0, %s174
    $region4: #{tpu_custom_call.1} parent=1 // loop_header_branch
      %27 = sbr.rel (%p25) target = $region8
    $region5: #{tpu_custom_call.1} parent=1 // loop_body
      %s29 = ssub.s32 %s24, 1
      %s30 = ssub.s32 %s24, 2
      %s31 = sadd.s32 %s24, 1
      %s32 = ssub.s32 %s24, %s31
      %p33 = scmp.eq.s32.totalorder %s32, 0
      %s35 = sadd.s32 %s34, 1
      %s36 = scalar_select %p33, %s34, %s35
      %p39 = pneg %p33
      %p40 = scmp.eq.s32.totalorder %s24, 1
      %p41 = por %p39, %p40
      %p42 = scmp.ne.s32.totalorder %s34, %s37
      %p43 = scmp.eq.s32.totalorder %s24, 0
      %p44 = por %p42, %p43
      %p45 = scmp.ne.s32.totalorder %s34, %s37
      %p46 = scmp.eq.s32.totalorder %s29, 1
      %p47 = por %p45, %p46
      %p48 = scmp.ne.s32.totalorder %s37, %s38
      %p49 = scmp.eq.s32.totalorder %s29, 0
      %p50 = por %p48, %p49
      %p51 = scmp.ne.s32.totalorder %s37, %s38
      %p52 = scmp.eq.s32.totalorder %s30, 1
      %p53 = por %p51, %p52
      %p55 = scmp.ne.s32.totalorder %s38, %s54
      %p56 = scmp.eq.s32.totalorder %s30, 0
      %p57 = por %p55, %p56
      %s59 = sadd.s32 %s58, 1
      %p62 = scmp.eq.s32.totalorder %s24, 1
      %p63 = scmp.ne.s32.totalorder %s58, %s60
      %p64 = scmp.eq.s32.totalorder %s24, 0
      %p65 = por %p63, %p64
      %p66 = scmp.ne.s32.totalorder %s58, %s60
      %p67 = scmp.eq.s32.totalorder %s29, 1
      %p68 = por %p66, %p67
      %p69 = scmp.ne.s32.totalorder %s60, %s61
      %p70 = scmp.eq.s32.totalorder %s29, 0
      %p71 = por %p69, %p70
      %p72 = scmp.ne.s32.totalorder %s60, %s61
      %p73 = scmp.eq.s32.totalorder %s30, 1
      %p74 = por %p72, %p73
      %p76 = scmp.ne.s32.totalorder %s61, %s75
      %p77 = scmp.eq.s32.totalorder %s30, 0
      %p78 = por %p76, %p77
      %s80 = sadd.s32 %s79, 1
      %p83 = scmp.eq.s32.totalorder %s24, 1
      %p84 = scmp.ne.s32.totalorder %s79, %s81
      %p85 = scmp.eq.s32.totalorder %s24, 0
      %p86 = por %p84, %p85
      %p87 = scmp.ne.s32.totalorder %s79, %s81
      %p88 = scmp.eq.s32.totalorder %s29, 1
      %p89 = por %p87, %p88
      %p90 = scmp.ne.s32.totalorder %s81, %s82
      %p91 = scmp.eq.s32.totalorder %s29, 0
      %p92 = por %p90, %p91
      %p93 = scmp.ne.s32.totalorder %s81, %s82
      %p94 = scmp.eq.s32.totalorder %s30, 1
      %p95 = por %p93, %p94
      %p97 = scmp.ne.s32.totalorder %s82, %s96
      %p98 = scmp.eq.s32.totalorder %s30, 0
      %p99 = por %p97, %p98
      %s101 = sadd.s32 %s100, 1
      %p104 = scmp.eq.s32.totalorder %s24, 1
      %p105 = scmp.ne.s32.totalorder %s100, %s102
      %p106 = scmp.eq.s32.totalorder %s24, 0
      %p107 = por %p105, %p106
      %p108 = scmp.ne.s32.totalorder %s100, %s102
      %p109 = scmp.eq.s32.totalorder %s29, 1
      %p110 = por %p108, %p109
      %p111 = scmp.ne.s32.totalorder %s102, %s103
      %p112 = scmp.eq.s32.totalorder %s29, 0
      %p113 = por %p111, %p112
      %p114 = scmp.ne.s32.totalorder %s102, %s103
      %p115 = scmp.eq.s32.totalorder %s30, 1
      %p116 = por %p114, %p115
      %p118 = scmp.ne.s32.totalorder %s103, %s117
      %p119 = scmp.eq.s32.totalorder %s30, 0
      %p120 = por %p118, %p119
      %s122 = sadd.s32 %s121, 1
      %p125 = scmp.eq.s32.totalorder %s24, 1
      %p126 = scmp.ne.s32.totalorder %s121, %s123
      %p127 = scmp.eq.s32.totalorder %s24, 0
      %p128 = por %p126, %p127
      %p129 = scmp.ne.s32.totalorder %s121, %s123
      %p130 = scmp.eq.s32.totalorder %s29, 1
      %p131 = por %p129, %p130
      %p132 = scmp.ne.s32.totalorder %s123, %s124
      %p133 = scmp.eq.s32.totalorder %s29, 0
      %p134 = por %p132, %p133
      %p135 = scmp.ne.s32.totalorder %s123, %s124
      %p136 = scmp.eq.s32.totalorder %s30, 1
      %p137 = por %p135, %p136
      %p139 = scmp.ne.s32.totalorder %s124, %s138
      %p140 = scmp.eq.s32.totalorder %s30, 0
      %p141 = por %p139, %p140
      %s142 = ssub.s32 %s24, %s31
      %p143 = scmp.eq.s32.totalorder %s142, 0
      %s145 = sadd.s32 %s144, 1
      %s146 = scalar_select %p143, %s144, %s145
      %p149 = pneg %p143
      %p150 = scmp.eq.s32.totalorder %s24, 1
      %p151 = por %p149, %p150
      %p152 = scmp.ne.s32.totalorder %s144, %s147
      %p153 = scmp.eq.s32.totalorder %s24, 0
      %p154 = por %p152, %p153
      %p155 = scmp.ne.s32.totalorder %s144, %s147
      %p156 = scmp.eq.s32.totalorder %s29, 1
      %p157 = por %p155, %p156
      %p158 = scmp.ne.s32.totalorder %s147, %s148
      %p159 = scmp.eq.s32.totalorder %s29, 0
      %p160 = por %p158, %p159
      %p161 = scmp.ne.s32.totalorder %s147, %s148
      %p162 = scmp.eq.s32.totalorder %s30, 1
      %p163 = por %p161, %p162
      %p165 = scmp.ne.s32.totalorder %s148, %s164
      %p166 = scmp.eq.s32.totalorder %s30, 0
      %p167 = por %p165, %p166
      %s168 = ssub.s32 %s24, %s31
      %p169 = scmp.eq.s32.totalorder %s168, 0
      %s171 = sadd.s32 %s170, 1
      %s172 = scalar_select %p169, %s170, %s171
      %p175 = pneg %p169
      %p176 = scmp.eq.s32.totalorder %s24, 1
      %p177 = por %p175, %p176
      %p178 = scmp.ne.s32.totalorder %s170, %s173
      %p179 = scmp.eq.s32.totalorder %s24, 0
      %p180 = por %p178, %p179
      %p181 = scmp.ne.s32.totalorder %s170, %s173
      %p182 = scmp.eq.s32.totalorder %s29, 1
      %p183 = por %p181, %p182
      %p184 = scmp.ne.s32.totalorder %s173, %s174
      %p185 = scmp.eq.s32.totalorder %s29, 0
      %p186 = por %p184, %p185
      %p187 = scmp.ne.s32.totalorder %s173, %s174
      %p188 = scmp.eq.s32.totalorder %s30, 1
      %p189 = por %p187, %p188
      %p191 = scmp.ne.s32.totalorder %s174, %s190
      %p192 = scmp.eq.s32.totalorder %s30, 0
      %p193 = por %p191, %p192
      %p194 = scmp.le.s32.totalorder 1, %s24
      %p195 = scmp.lt.s32.totalorder %s24, 3
      %p196 = pnand %p194, %p195
      %p197 = pneg %p196
      // Predicated region
      $region9: #{tpu_custom_call.1} parent=5 // pred_check
        _
      $region10: #{tpu_custom_call.1} parent=5 // pred_check_branch
        %199 = sbr.rel (%p196) target = $region12
      $region11: #{tpu_custom_call.1} parent=5 // pred_region
        %s200 = ssub.s32 %s24, 1
        // Predicated region
        $region13: #{tpu_custom_call.1} parent=11 // pred_check
          %p201 = pneg %p71
        $region14: #{tpu_custom_call.1} parent=11 // pred_check_branch
          %203 = sbr.rel (%p201) target = $region16
        $region15: #{tpu_custom_call.1} parent=11 // pred_region
          %s205 = ssub.s32 4096, 4096
          %206 = vsyncadd [#allocation6], %s205
          %s207 = sshll.u32 [#allocation5], 4
          %s208 = int_to_ptr.vmem [resolvable:$true] %s207
          %213 = dma.hbm_to_vmem [thread:$0]  %s1, 4096, %s208, [#allocation6], 128, 128, 8
        $region16: #{tpu_custom_call.1} parent=11 // pred_fallthru
          _
        // Predicated region
        $region17: #{tpu_custom_call.1} parent=11 // pred_check
          %p214 = pneg %p92
        $region18: #{tpu_custom_call.1} parent=11 // pred_check_branch
          %216 = sbr.rel (%p214) target = $region20
        $region19: #{tpu_custom_call.1} parent=11 // pred_region
          %s218 = ssub.s32 16, 16
          %219 = vsyncadd [#allocation6], %s218
          %s221 = sshll.u32 [#allocation7], 4
          %s222 = int_to_ptr.vmem [resolvable:$true] %s221
          %224 = dma.hbm_to_vmem [thread:$0]  %s2, 16, %s222, [#allocation6]
        $region20: #{tpu_custom_call.1} parent=11 // pred_fallthru
          _
        // Predicated region
        $region21: #{tpu_custom_call.1} parent=11 // pred_check
          %p225 = pneg %p113
        $region22: #{tpu_custom_call.1} parent=11 // pred_check_branch
          %227 = sbr.rel (%p225) target = $region24
        $region23: #{tpu_custom_call.1} parent=11 // pred_region
          %s229 = ssub.s32 4096, 4096
          %230 = vsyncadd [#allocation9], %s229
          %s231 = sshll.u32 [#allocation8], 4
          %s232 = int_to_ptr.vmem [resolvable:$true] %s231
          %237 = dma.hbm_to_vmem [thread:$0]  %s3, 4096, %s232, [#allocation9], 256, 256, 16
        $region24: #{tpu_custom_call.1} parent=11 // pred_fallthru
          _
        // Predicated region
        $region25: #{tpu_custom_call.1} parent=11 // pred_check
          %p238 = pneg %p134
        $region26: #{tpu_custom_call.1} parent=11 // pred_check_branch
          %240 = sbr.rel (%p238) target = $region28
        $region27: #{tpu_custom_call.1} parent=11 // pred_region
          %s242 = ssub.s32 32, 32
          %243 = vsyncadd [#allocation9], %s242
          %s245 = sshll.u32 [#allocation10], 4
          %s246 = int_to_ptr.vmem [resolvable:$true] %s245
          %248 = dma.hbm_to_vmem [thread:$0]  %s4, 32, %s246, [#allocation9]
        $region28: #{tpu_custom_call.1} parent=11 // pred_fallthru
          _
      $region12: #{tpu_custom_call.1} parent=5 // pred_fallthru
        _
      %p249 = scmp.lt.s32.totalorder %s24, 2
      // Predicated region
      $region29: #{tpu_custom_call.1} parent=5 // pred_check
        %p250 = pneg %p249
      $region30: #{tpu_custom_call.1} parent=5 // pred_check_branch
        %252 = sbr.rel (%p250) target = $region32
      $region31: #{tpu_custom_call.1} parent=5 // pred_region
        // Predicated region
        $region33: #{tpu_custom_call.1} parent=31 // pred_check
          %p253 = pneg %p44
        $region34: #{tpu_custom_call.1} parent=31 // pred_check_branch
          %255 = sbr.rel (%p253) target = $region36
        $region35: #{tpu_custom_call.1} parent=31 // pred_region
          %s256 = sand.u32 %s34, 1
          %s257 = scalar_lea.sflag [#allocation3], %s256
          %s258 = sand.u32 %s34, 1
          %s259 = smul.addr %s258, 16
          %s260 = scalar_lea.vmem [#allocation2], %s259
          %s262 = ssub.s32 256, 256
          %263 = vsyncadd %s257, %s262
          %s264 = smul.addr %s24, 2
          %s265 = smul.addr %s264, 128
          %s266 = scalar_lea.hbm %s0, %s265
          %s268 = sshll.u32 %s260, 4
          %s269 = int_to_ptr.vmem [resolvable:$true] %s268
          %271 = dma.hbm_to_vmem [thread:$0]  %s266, 256, %s269, %s257
        $region36: #{tpu_custom_call.1} parent=31 // pred_fallthru
          _
      $region32: #{tpu_custom_call.1} parent=5 // pred_fallthru
        _
      %p272 = scmp.le.s32.totalorder 1, %s24
      %p273 = scmp.lt.s32.totalorder %s24, 3
      %p274 = pnand %p272, %p273
      %p275 = pneg %p274
      // Predicated region
      $region37: #{tpu_custom_call.1} parent=5 // pred_check
        _
      $region38: #{tpu_custom_call.1} parent=5 // pred_check_branch
        %277 = sbr.rel (%p274) target = $region40
      $region39: #{tpu_custom_call.1} parent=5 // pred_region
        %s278 = ssub.s32 %s24, 1
        %s279 = sand.u32 %s37, 1
        %s280 = scalar_lea.sflag [#allocation3], %s279
        %s281 = sand.u32 %s37, 1
        %s282 = smul.addr %s281, 16
        %s283 = scalar_lea.vmem [#allocation2], %s282
        // Predicated region
        $region41: #{tpu_custom_call.1} parent=39 // pred_check
          %p284 = pneg %p50
        $region42: #{tpu_custom_call.1} parent=39 // pred_check_branch
          %286 = sbr.rel (%p284) target = $region44
        $region43: #{tpu_custom_call.1} parent=39 // pred_region
          %287 = dma.done %s280, 256
        $region44: #{tpu_custom_call.1} parent=39 // pred_fallthru
          _
        // Predicated region
        $region45: #{tpu_custom_call.1} parent=39 // pred_check
          %p288 = pneg %p71
        $region46: #{tpu_custom_call.1} parent=39 // pred_check_branch
          %290 = sbr.rel (%p288) target = $region48
        $region47: #{tpu_custom_call.1} parent=39 // pred_region
          %291 = dma.done [#allocation6], 4096
        $region48: #{tpu_custom_call.1} parent=39 // pred_fallthru
          _
        // Predicated region
        $region49: #{tpu_custom_call.1} parent=39 // pred_check
          %p292 = pneg %p92
        $region50: #{tpu_custom_call.1} parent=39 // pred_check_branch
          %294 = sbr.rel (%p292) target = $region52
        $region51: #{tpu_custom_call.1} parent=39 // pred_region
          %295 = dma.done [#allocation6], 16
        $region52: #{tpu_custom_call.1} parent=39 // pred_fallthru
          _
        // Predicated region
        $region53: #{tpu_custom_call.1} parent=39 // pred_check
          %p296 = pneg %p113
        $region54: #{tpu_custom_call.1} parent=39 // pred_check_branch
          %298 = sbr.rel (%p296) target = $region56
        $region55: #{tpu_custom_call.1} parent=39 // pred_region
          %299 = dma.done [#allocation9], 4096
        $region56: #{tpu_custom_call.1} parent=39 // pred_fallthru
          _
        // Predicated region
        $region57: #{tpu_custom_call.1} parent=39 // pred_check
          %p300 = pneg %p134
        $region58: #{tpu_custom_call.1} parent=39 // pred_check_branch
          %302 = sbr.rel (%p300) target = $region60
        $region59: #{tpu_custom_call.1} parent=39 // pred_region
          %303 = dma.done [#allocation9], 32
        $region60: #{tpu_custom_call.1} parent=39 // pred_fallthru
          _
        %s304 = sand.u32 %s37, 1
        %s305 = scalar_lea.sflag [#allocation3], %s304
        %s306 = sand.u32 %s37, 1
        %s307 = smul.addr %s306, 16
        %s308 = scalar_lea.vmem [#allocation2], %s307
        %p309 = pneg %p50
        %p310 = pneg %p47
        %p311 = pneg %p71
        %p312 = pneg %p68
        %p313 = pneg %p92
        %p314 = pneg %p89
        %p315 = pneg %p113
        %p316 = pneg %p110
        %p317 = pneg %p134
        %p318 = pneg %p131
        %p319 = pneg %p160
        %p320 = pneg %p157
        %s321 = sand.u32 %s147, 1
        %s322 = scalar_lea.sflag [#allocation4], %s321
        %s323 = sand.u32 %s147, 1
        %s324 = smul.addr %s323, 16
        %s325 = scalar_lea.vmem [#allocation11], %s324
        %p326 = pneg %p186
        %p327 = pneg %p183
        %s328 = sand.u32 %s173, 1
        %s329 = scalar_lea.sflag [#allocation13], %s328
        %s330 = sand.u32 %s173, 1
        %s331 = smul.addr %s330, 8
        %s332 = scalar_lea.vmem [#allocation12], %s331
        %v333 = vld [vmem:[%s283] sm:$0xff]
        %v334 = vld [vmem:[%s283 + $0x8] sm:$0xff]
        %v335 = vld [vmem:[#allocation5] sm:$0xff]
        %v336 = vld [vmem:[#allocation5 + $0x8] sm:$0xff]
        %v337 = vld [vmem:[#allocation5 + $0x10] sm:$0xff]
        %v338 = vld [vmem:[#allocation5 + $0x18] sm:$0xff]
        %v339 = vld [vmem:[#allocation5 + $0x20] sm:$0xff]
        %v340 = vld [vmem:[#allocation5 + $0x28] sm:$0xff]
        %v341 = vld [vmem:[#allocation5 + $0x30] sm:$0xff]
        %v342 = vld [vmem:[#allocation5 + $0x38] sm:$0xff]
        %v343 = vld [vmem:[#allocation5 + $0x40] sm:$0xff]
        %v344 = vld [vmem:[#allocation5 + $0x48] sm:$0xff]
        %v345 = vld [vmem:[#allocation5 + $0x50] sm:$0xff]
        %v346 = vld [vmem:[#allocation5 + $0x58] sm:$0xff]
        %v347 = vld [vmem:[#allocation5 + $0x60] sm:$0xff]
        %v348 = vld [vmem:[#allocation5 + $0x68] sm:$0xff]
        %v349 = vld [vmem:[#allocation5 + $0x70] sm:$0xff]
        %v350 = vld [vmem:[#allocation5 + $0x78] sm:$0xff]
        %v351 = vld [vmem:[#allocation5 + $0x80] sm:$0xff]
        %v352 = vld [vmem:[#allocation5 + $0x88] sm:$0xff]
        %v353 = vld [vmem:[#allocation5 + $0x90] sm:$0xff]
        %v354 = vld [vmem:[#allocation5 + $0x98] sm:$0xff]
        %v355 = vld [vmem:[#allocation5 + $0xa0] sm:$0xff]
        %v356 = vld [vmem:[#allocation5 + $0xa8] sm:$0xff]
        %v357 = vld [vmem:[#allocation5 + $0xb0] sm:$0xff]
        %v358 = vld [vmem:[#allocation5 + $0xb8] sm:$0xff]
        %v359 = vld [vmem:[#allocation5 + $0xc0] sm:$0xff]
        %v360 = vld [vmem:[#allocation5 + $0xc8] sm:$0xff]
        %v361 = vld [vmem:[#allocation5 + $0xd0] sm:$0xff]
        %v362 = vld [vmem:[#allocation5 + $0xd8] sm:$0xff]
        %v363 = vld [vmem:[#allocation5 + $0xe0] sm:$0xff]
        %v364 = vld [vmem:[#allocation5 + $0xe8] sm:$0xff]
        %v365 = vld [vmem:[#allocation5 + $0xf0] sm:$0xff]
        %v366 = vld [vmem:[#allocation5 + $0xf8] sm:$0xff]
        %v367 = vld [vmem:[#allocation7] sm:$0x1]
        %v369 = vlaneseq
        %v370 = vshrl.u32 %v369, 7
        %v371 = vsub.s32 0, %v370
        %v372 = vrot.slane %v367, %v371
        %374 = vmatprep.subr.mxu0 0.0
        %375 = vmatpush1.msra.mxu0 %v335
        %376 = vmatprep.subr.mxu0 0.0
        %377 = vmatpush1.msra.mxu0 %v336
        %378 = vmatprep.subr.mxu0 0.0
        %379 = vmatpush1.msra.mxu0 %v337
        %380 = vmatprep.subr.mxu0 0.0
        %381 = vmatpush1.msra.mxu0 %v338
        %382 = vmatprep.subr.mxu0 0.0
        %383 = vmatpush1.msra.mxu0 %v339
        %384 = vmatprep.subr.mxu0 0.0
        %385 = vmatpush1.msra.mxu0 %v340
        %386 = vmatprep.subr.mxu0 0.0
        %387 = vmatpush1.msra.mxu0 %v341
        %388 = vmatprep.subr.mxu0 0.0
        %389 = vmatpush1.msra.mxu0 %v342
        %390 = vmatprep.subr.mxu0 0.0
        %391 = vmatpush1.msra.mxu0 %v343
        %392 = vmatprep.subr.mxu0 0.0
        %393 = vmatpush1.msra.mxu0 %v344
        %394 = vmatprep.subr.mxu0 0.0
        %395 = vmatpush1.msra.mxu0 %v345
        %396 = vmatprep.subr.mxu0 0.0
        %397 = vmatpush1.msra.mxu0 %v346
        %398 = vmatprep.subr.mxu0 0.0
        %399 = vmatpush1.msra.mxu0 %v347
        %400 = vmatprep.subr.mxu0 0.0
        %401 = vmatpush1.msra.mxu0 %v348
        %402 = vmatprep.subr.mxu0 0.0
        %403 = vmatpush1.msra.mxu0 %v349
        %404 = vmatprep.subr.mxu0 0.0
        %405 = vmatpush1.msra.mxu0 %v350
        %406 = vmatprep.subr.mxu0 0.0
        %407 = vmatpush1.msra.mxu0 %v351
        %408 = vmatprep.subr.mxu0 0.0
        %409 = vmatpush1.msra.mxu0 %v352
        %410 = vmatprep.subr.mxu0 0.0
        %411 = vmatpush1.msra.mxu0 %v353
        %412 = vmatprep.subr.mxu0 0.0
        %413 = vmatpush1.msra.mxu0 %v354
        %414 = vmatprep.subr.mxu0 0.0
        %415 = vmatpush1.msra.mxu0 %v355
        %416 = vmatprep.subr.mxu0 0.0
        %417 = vmatpush1.msra.mxu0 %v356
        %418 = vmatprep.subr.mxu0 0.0
        %419 = vmatpush1.msra.mxu0 %v357
        %420 = vmatprep.subr.mxu0 0.0
        %421 = vmatpush1.msra.mxu0 %v358
        %422 = vmatprep.subr.mxu0 0.0
        %423 = vmatpush1.msra.mxu0 %v359
        %424 = vmatprep.subr.mxu0 0.0
        %425 = vmatpush1.msra.mxu0 %v360
        %426 = vmatprep.subr.mxu0 0.0
        %427 = vmatpush1.msra.mxu0 %v361
        %428 = vmatprep.subr.mxu0 0.0
        %429 = vmatpush1.msra.mxu0 %v362
        %430 = vmatprep.subr.mxu0 0.0
        %431 = vmatpush1.msra.mxu0 %v363
        %432 = vmatprep.subr.mxu0 0.0
        %433 = vmatpush1.msra.mxu0 %v364
        %434 = vmatprep.subr.mxu0 0.0
        %435 = vmatpush1.msra.mxu0 %v365
        %436 = vmatprep.subr.mxu0 0.0
        %437 = vmatpush1.msra.mxu0 %v366
        %438 = vmatprep.mubr.f32.mxu0 %v334
        %439 = vmatmul.mubr.f32.gmra.mrb[0].mxu0 %v333
        %v440 = vpop.f32.mrb[0].mxu0
        %v441 = vadd.f32 %v372, %v440
        %v442 = vpop.f32.mrb[0].mxu0
        %443 = vdwg.mxu0
        %v444 = vmax.f32 %v441, 0.0
        %445 = vst [vmem:[%s332] sm:$0xff] %v444
        %v446 = vld [vmem:[#allocation8] sm:$0xff]
        %v447 = vld [vmem:[#allocation8 + $0x8] sm:$0xff]
        %v448 = vld [vmem:[#allocation8 + $0x10] sm:$0xff]
        %v449 = vld [vmem:[#allocation8 + $0x18] sm:$0xff]
        %v450 = vld [vmem:[#allocation8 + $0x20] sm:$0xff]
        %v451 = vld [vmem:[#allocation8 + $0x28] sm:$0xff]
        %v452 = vld [vmem:[#allocation8 + $0x30] sm:$0xff]
        %v453 = vld [vmem:[#allocation8 + $0x38] sm:$0xff]
        %v454 = vld [vmem:[#allocation8 + $0x40] sm:$0xff]
        %v455 = vld [vmem:[#allocation8 + $0x48] sm:$0xff]
        %v456 = vld [vmem:[#allocation8 + $0x50] sm:$0xff]
        %v457 = vld [vmem:[#allocation8 + $0x58] sm:$0xff]
        %v458 = vld [vmem:[#allocation8 + $0x60] sm:$0xff]
        %v459 = vld [vmem:[#allocation8 + $0x68] sm:$0xff]
        %v460 = vld [vmem:[#allocation8 + $0x70] sm:$0xff]
        %v461 = vld [vmem:[#allocation8 + $0x78] sm:$0xff]
        %v462 = vld [vmem:[#allocation8 + $0x80] sm:$0xff]
        %v463 = vld [vmem:[#allocation8 + $0x88] sm:$0xff]
        %v464 = vld [vmem:[#allocation8 + $0x90] sm:$0xff]
        %v465 = vld [vmem:[#allocation8 + $0x98] sm:$0xff]
        %v466 = vld [vmem:[#allocation8 + $0xa0] sm:$0xff]
        %v467 = vld [vmem:[#allocation8 + $0xa8] sm:$0xff]
        %v468 = vld [vmem:[#allocation8 + $0xb0] sm:$0xff]
        %v469 = vld [vmem:[#allocation8 + $0xb8] sm:$0xff]
        %v470 = vld [vmem:[#allocation8 + $0xc0] sm:$0xff]
        %v471 = vld [vmem:[#allocation8 + $0xc8] sm:$0xff]
        %v472 = vld [vmem:[#allocation8 + $0xd0] sm:$0xff]
        %v473 = vld [vmem:[#allocation8 + $0xd8] sm:$0xff]
        %v474 = vld [vmem:[#allocation8 + $0xe0] sm:$0xff]
        %v475 = vld [vmem:[#allocation8 + $0xe8] sm:$0xff]
        %v476 = vld [vmem:[#allocation8 + $0xf0] sm:$0xff]
        %v477 = vld [vmem:[#allocation8 + $0xf8] sm:$0xff]
        %v478 = vld [vmem:[#allocation10] sm:$0x3]
        %v480 = vlaneseq
        %v481 = vshrl.u32 %v480, 7
        %v482 = vsub.s32 0, %v481
        %v483 = vrot.slane %v478, %v482
        %v484 = vlaneseq
        %v485 = vshrl.u32 %v484, 7
        %v486 = vsub.s32 1, %v485
        %v487 = vrot.slane %v478, %v486
        %490 = vmatprep.subr.mxu0 %v447
        %491 = vmatpush1.msra.mxu0 %v446
        %492 = vmatprep.subr.mxu0 %v449
        %493 = vmatpush1.msra.mxu0 %v448
        %494 = vmatprep.subr.mxu0 %v451
        %495 = vmatpush1.msra.mxu0 %v450
        %496 = vmatprep.subr.mxu0 %v453
        %497 = vmatpush1.msra.mxu0 %v452
        %498 = vmatprep.subr.mxu0 %v455
        %499 = vmatpush1.msra.mxu0 %v454
        %500 = vmatprep.subr.mxu0 %v457
        %501 = vmatpush1.msra.mxu0 %v456
        %502 = vmatprep.subr.mxu0 %v459
        %503 = vmatpush1.msra.mxu0 %v458
        %504 = vmatprep.subr.mxu0 %v461
        %505 = vmatpush1.msra.mxu0 %v460
        %506 = vmatprep.subr.mxu0 %v463
        %507 = vmatpush1.msra.mxu0 %v462
        %508 = vmatprep.subr.mxu0 %v465
        %509 = vmatpush1.msra.mxu0 %v464
        %510 = vmatprep.subr.mxu0 %v467
        %511 = vmatpush1.msra.mxu0 %v466
        %512 = vmatprep.subr.mxu0 %v469
        %513 = vmatpush1.msra.mxu0 %v468
        %514 = vmatprep.subr.mxu0 %v471
        %515 = vmatpush1.msra.mxu0 %v470
        %516 = vmatprep.subr.mxu0 %v473
        %517 = vmatpush1.msra.mxu0 %v472
        %518 = vmatprep.subr.mxu0 %v475
        %519 = vmatpush1.msra.mxu0 %v474
        %520 = vmatprep.subr.mxu0 %v477
        %521 = vmatpush1.msra.mxu0 %v476
        %522 = vmatprep.subr.mxu0 0.0
        %523 = vmatpush1.msra.mxu0 0.0
        %524 = vmatprep.subr.mxu0 0.0
        %525 = vmatpush1.msra.mxu0 0.0
        %526 = vmatprep.subr.mxu0 0.0
        %527 = vmatpush1.msra.mxu0 0.0
        %528 = vmatprep.subr.mxu0 0.0
        %529 = vmatpush1.msra.mxu0 0.0
        %530 = vmatprep.subr.mxu0 0.0
        %531 = vmatpush1.msra.mxu0 0.0
        %532 = vmatprep.subr.mxu0 0.0
        %533 = vmatpush1.msra.mxu0 0.0
        %534 = vmatprep.subr.mxu0 0.0
        %535 = vmatpush1.msra.mxu0 0.0
        %536 = vmatprep.subr.mxu0 0.0
        %537 = vmatpush1.msra.mxu0 0.0
        %538 = vmatprep.subr.mxu0 0.0
        %539 = vmatpush1.msra.mxu0 0.0
        %540 = vmatprep.subr.mxu0 0.0
        %541 = vmatpush1.msra.mxu0 0.0
        %542 = vmatprep.subr.mxu0 0.0
        %543 = vmatpush1.msra.mxu0 0.0
        %544 = vmatprep.subr.mxu0 0.0
        %545 = vmatpush1.msra.mxu0 0.0
        %546 = vmatprep.subr.mxu0 0.0
        %547 = vmatpush1.msra.mxu0 0.0
        %548 = vmatprep.subr.mxu0 0.0
        %549 = vmatpush1.msra.mxu0 0.0
        %550 = vmatprep.subr.mxu0 0.0
        %551 = vmatpush1.msra.mxu0 0.0
        %552 = vmatprep.subr.mxu0 0.0
        %553 = vmatpush1.msra.mxu0 0.0
        %554 = vmatprep.mubr.f32.mxu0 0.0
        %555 = vmatmul.mubr.f32.gmra.mrb[0].mxu0 %v444
        %v556 = vpop.f32.mrb[0].mxu0
        %v557 = vadd.f32 %v483, %v556
        %v558 = vpop.f32.mrb[0].mxu0
        %v559 = vadd.f32 %v487, %v558
        %560 = vdwg.mxu0
        %561 = vst [vmem:[%s325] sm:$0xff] %v557
        %562 = vst [vmem:[%s325 + $0x8] sm:$0xff] %v559
        %s563 = sand.u32 %s147, 1
        %s564 = scalar_lea.sflag [#allocation4], %s563
        %s565 = sand.u32 %s147, 1
        %s566 = smul.addr %s565, 16
        %s567 = scalar_lea.vmem [#allocation11], %s566
        %s568 = sand.u32 %s173, 1
        %s569 = scalar_lea.sflag [#allocation13], %s568
        %s570 = sand.u32 %s173, 1
        %s571 = smul.addr %s570, 8
        %s572 = scalar_lea.vmem [#allocation12], %s571
        // Predicated region
        $region61: #{tpu_custom_call.1} parent=39 // pred_check
          %p573 = pneg %p157
        $region62: #{tpu_custom_call.1} parent=39 // pred_check_branch
          %575 = sbr.rel (%p573) target = $region64
        $region63: #{tpu_custom_call.1} parent=39 // pred_region
          %s577 = ssub.s32 256, 256
          %578 = vsyncadd %s564, %s577
          %s579 = smul.addr %s29, 2
          %s580 = smul.addr %s579, 128
          %s581 = scalar_lea.hbm %s5, %s580
          %s583 = sshll.u32 %s567, 4
          %s584 = int_to_ptr.vmem [resolvable:$true] %s583
          %586 = dma.vmem_to_hbm [thread:$0]  %s584, 256, %s581, %s564
        $region64: #{tpu_custom_call.1} parent=39 // pred_fallthru
          _
        // Predicated region
        $region65: #{tpu_custom_call.1} parent=39 // pred_check
          %p587 = pneg %p183
        $region66: #{tpu_custom_call.1} parent=39 // pred_check_branch
          %589 = sbr.rel (%p587) target = $region68
        $region67: #{tpu_custom_call.1} parent=39 // pred_region
          %s591 = ssub.s32 128, 128
          %592 = vsyncadd %s569, %s591
          %s593 = smul.addr %s29, 128
          %s594 = scalar_lea.hbm %s6, %s593
          %s596 = sshll.u32 %s572, 4
          %s597 = int_to_ptr.vmem [resolvable:$true] %s596
          %599 = dma.vmem_to_hbm [thread:$0]  %s597, 128, %s594, %s569
        $region68: #{tpu_custom_call.1} parent=39 // pred_fallthru
          _
      $region40: #{tpu_custom_call.1} parent=5 // pred_fallthru
        _
      %p600 = scmp.le.s32.totalorder 2, %s24
      // Predicated region
      $region69: #{tpu_custom_call.1} parent=5 // pred_check
        %p601 = pneg %p600
      $region70: #{tpu_custom_call.1} parent=5 // pred_check_branch
        %603 = sbr.rel (%p601) target = $region72
      $region71: #{tpu_custom_call.1} parent=5 // pred_region
        %s604 = ssub.s32 %s24, 2
        // Predicated region
        $region73: #{tpu_custom_call.1} parent=71 // pred_check
          %p605 = pneg %p163
        $region74: #{tpu_custom_call.1} parent=71 // pred_check_branch
          %607 = sbr.rel (%p605) target = $region76
        $region75: #{tpu_custom_call.1} parent=71 // pred_region
          %s608 = sand.u32 %s148, 1
          %s609 = scalar_lea.sflag [#allocation4], %s608
          %s610 = sand.u32 %s148, 1
          %s611 = smul.addr %s610, 16
          %s612 = scalar_lea.vmem [#allocation11], %s611
          %613 = dma.done %s609, 256
        $region76: #{tpu_custom_call.1} parent=71 // pred_fallthru
          _
        // Predicated region
        $region77: #{tpu_custom_call.1} parent=71 // pred_check
          %p614 = pneg %p189
        $region78: #{tpu_custom_call.1} parent=71 // pred_check_branch
          %616 = sbr.rel (%p614) target = $region80
        $region79: #{tpu_custom_call.1} parent=71 // pred_region
          %s617 = sand.u32 %s174, 1
          %s618 = scalar_lea.sflag [#allocation13], %s617
          %s619 = sand.u32 %s174, 1
          %s620 = smul.addr %s619, 8
          %s621 = scalar_lea.vmem [#allocation12], %s620
          %622 = dma.done %s618, 128
        $region80: #{tpu_custom_call.1} parent=71 // pred_fallthru
          _
      $region72: #{tpu_custom_call.1} parent=5 // pred_fallthru
        _
    $region6: #{tpu_custom_call.1} parent=1 // loop_footer
      %s28 = sadd.s32 1, %s24
    $region7: #{tpu_custom_call.1} parent=1 // loop_footer_branch
      %23 = sbr.rel target = $region3
    $region8: #{tpu_custom_call.1} parent=1 // loop_exit
      _
    %623 = vsyncpa [#allocation3], 1
    %s624 = scalar_lea.sflag [#allocation3], 1
    %625 = vsyncpa %s624, 1
    %626 = vsyncpa [#allocation6], 1
    %627 = vsyncpa [#allocation9], 1
    %628 = vsyncpa [#allocation4], 1
    %s629 = scalar_lea.sflag [#allocation4], 1
    %630 = vsyncpa %s629, 1
    %631 = vsyncpa [#allocation13], 1
    %s632 = scalar_lea.sflag [#allocation13], 1
    %633 = vsyncpa %s632, 1

</llo_original>
